<compile_context>
chip_gen: v7x
topology: tpu7x:2x2x1
jax: 0.10.0
libtpu: 0.0.40
codegen_flags: <defaults>
</compile_context>

<pallas_src>
import functools

import jax
import jax.numpy as jnp
from jax import lax
from jax.experimental import pallas as pl
from jax.experimental.pallas import tpu as pltpu

HIDDEN = 32   # small stand-in for the module's hidden_size=512


# ---------------------------------------------------------------------------
# in-kernel helpers
# ---------------------------------------------------------------------------
def _softmax_lanes(scores):
    """Numerically stable softmax along the last (lane) axis of a (1, L) tile."""
    m = jnp.max(scores, axis=-1, keepdims=True)
    p = jnp.exp(scores - m)
    denom = jnp.sum(p, axis=-1, keepdims=True)
    return p * pl.reciprocal(denom, approx=True)


def _row_vs_rows(row, rows):
    """(1, H) contracted with (L, H) over H on the MXU -> (1, L); no explicit transpose."""
    return lax.dot_general(row, rows, (((1,), (1,)), ((), ())),
                           preferred_element_type=jnp.float32)


# ---------------------------------------------------------------------------
# kernels (one per attention method; one batch element per grid step)
# ---------------------------------------------------------------------------
def _dot_kernel(h_ref, e_ref, o_ref):
    h = h_ref[0]                                   # (1, H)
    e = e_ref[0]                                   # (L, H)
    o_ref[0] = _softmax_lanes(_row_vs_rows(h, e))  # (1, L)


def _general_kernel(h_ref, e_ref, w_ref, b_ref, o_ref):
    h = h_ref[0]                                   # (1, H)
    e = e_ref[0]                                   # (L, H)
    # sum_o h_o * (W e_l + b)_o  ==  (h @ W) . e_l  +  h . b
    h_proj = jnp.dot(h, w_ref[...], preferred_element_type=jnp.float32)   # (1, H)
    bias_term = jnp.sum(h * b_ref[...], axis=-1, keepdims=True)           # (1, 1)
    scores = _row_vs_rows(h_proj, e) + bias_term                          # (1, L)
    o_ref[0] = _softmax_lanes(scores)


def _concat_kernel(h_ref, e_ref, wh_ref, we_ref, b_ref, v_ref, o_ref):
    h = h_ref[0]                                   # (1, H)
    e = e_ref[0]                                   # (L, H)
    h_term = jnp.dot(h, wh_ref[...], preferred_element_type=jnp.float32)  # (1, H) L-invariant
    e_term = jnp.dot(e, we_ref[...], preferred_element_type=jnp.float32)  # (L, H)
    energy = jnp.tanh(e_term + h_term + b_ref[...])                       # (L, H)
    scores = _row_vs_rows(v_ref[...], energy)                             # (1, L)
    o_ref[0] = _softmax_lanes(scores)


# ---------------------------------------------------------------------------
# wrapper
# ---------------------------------------------------------------------------
@functools.partial(jax.jit, static_argnames=("method",))
def attn_forward(method, hidden, encoder_outputs, params):
    """Pallas version of Attn.forward. Returns (B, 1, L) softmax attention weights."""
    L, B, H = encoder_outputs.shape

    # batch-major layout: H on lanes, L on sublanes, scores come out as (1, L) rows.
    h_bm = jnp.transpose(hidden, (1, 0, 2))            # (B, 1, H)
    e_bm = jnp.transpose(encoder_outputs, (1, 0, 2))   # (B, L, H)

    out_shape = jax.ShapeDtypeStruct((B, 1, L), jnp.float32)
    out_spec = pl.BlockSpec((1, 1, L), lambda b: (b, 0, 0))
    h_spec = pl.BlockSpec((1, 1, H), lambda b: (b, 0, 0))
    e_spec = pl.BlockSpec((1, L, H), lambda b: (b, 0, 0))

    def invariant_spec(shape):
        # grid-invariant block: fetched once, stays resident across batch steps.
        return pl.BlockSpec(shape, lambda b: (0,) * len(shape))

    cp = pltpu.CompilerParams(
        dimension_semantics=("parallel",),
        vmem_limit_bytes=32 * 1024 * 1024,
    )

    if method == "dot":
        return pl.pallas_call(
            _dot_kernel, out_shape=out_shape, grid=(B,),
            in_specs=[h_spec, e_spec], out_specs=out_spec,
            compiler_params=cp,
        )(h_bm, e_bm)

    if method == "general":
        W = params["attn_w"]                      # (H, H) torch Linear weight (out, in)
        bias = params["attn_b"].reshape(1, H)
        return pl.pallas_call(
            _general_kernel, out_shape=out_shape, grid=(B,),
            in_specs=[h_spec, e_spec, invariant_spec((H, H)), invariant_spec((1, H))],
            out_specs=out_spec, compiler_params=cp,
        )(h_bm, e_bm, W, bias)

    if method == "concat":
        W = params["attn_w"]                      # (H, 2H) torch Linear weight (out, in)
        Wh = W[:, :H].T                           # (H, H), pre-transposed to (in, out)
        We = W[:, H:].T                           # (H, H), pre-transposed to (in, out)
        bias = params["attn_b"].reshape(1, H)
        v = params["v"].reshape(1, H)
        return pl.pallas_call(
            _concat_kernel, out_shape=out_shape, grid=(B,),
            in_specs=[h_spec, e_spec, invariant_spec((H, H)), invariant_spec((H, H)),
                      invariant_spec((1, H)), invariant_spec((1, H))],
            out_specs=out_spec, compiler_params=cp,
        )(h_bm, e_bm, Wh, We, bias, v)

    raise ValueError(method, "is not an appropriate attention method.")


# ---------------------------------------------------------------------------
# pure-JAX reference (mirrors the PyTorch forward exactly)
# ---------------------------------------------------------------------------
def attn_reference(method, hidden, encoder_outputs, params):
    if method == "dot":
        scores = jnp.sum(hidden * encoder_outputs, axis=2)
    elif method == "general":
        energy = encoder_outputs @ params["attn_w"].T + params["attn_b"]
        scores = jnp.sum(hidden * energy, axis=2)
    elif method == "concat":
        h_exp = jnp.broadcast_to(hidden, encoder_outputs.shape)
        cat = jnp.concatenate([h_exp, encoder_outputs], axis=2)
        energy = jnp.tanh(cat @ params["attn_w"].T + params["attn_b"])
        scores = jnp.sum(params["v"] * energy, axis=2)
    return jax.nn.softmax(scores.T, axis=1)[:, None, :]     # (B, 1, L)


# ---------------------------------------------------------------------------
# main
# ---------------------------------------------------------------------------
if __name__ == "__main__":
    key = jax.random.PRNGKey(0)
    L, B, H = 8, 2, HIDDEN                  # seq=8, batch=2, hidden=32

    k_h, k_e, k_w1, k_b1, k_w2, k_b2, k_v = jax.random.split(key, 7)
    hidden = jax.random.normal(k_h, (1, B, H), dtype=jnp.float32)
    encoder_outputs = jax.random.normal(k_e, (L, B, H), dtype=jnp.float32)

    params = {
        "dot": {},
        "general": {
            "attn_w": 0.1 * jax.random.normal(k_w1, (H, H), dtype=jnp.float32),
            "attn_b": 0.1 * jax.random.normal(k_b1, (H,), dtype=jnp.float32),
        },
        "concat": {
            "attn_w": 0.1 * jax.random.normal(k_w2, (H, 2 * H), dtype=jnp.float32),
            "attn_b": 0.1 * jax.random.normal(k_b2, (H,), dtype=jnp.float32),
            "v": 0.1 * jax.random.normal(k_v, (H,), dtype=jnp.float32),
        },
    }

    ok = True
    for method in ("dot", "general", "concat"):
        out = jax.block_until_ready(attn_forward(method, hidden, encoder_outputs,
                                                 params[method]))
        ref = attn_reference(method, hidden, encoder_outputs, params[method])
        assert out.shape == (B, 1, L), (method, out.shape)
        if not jnp.allclose(out, ref, atol=1e-3, rtol=1e-3):
            ok = False
            err = float(jnp.max(jnp.abs(out - ref)))
            print(f"MISMATCH in method={method}: max_abs_err={err}")

    if ok:
        print("KERNEL_OK")
</pallas_src>

<mosaic_0001>
module attributes {stable_mosaic.version = 11 : i64} {
  func.func @_dot_kernel(%arg0: i32, %arg1: memref<1x1x32xf32, #tpu.memory_space<vmem>>, %arg2: memref<1x8x32xf32, #tpu.memory_space<vmem>>, %arg3: memref<1x1x8xf32, #tpu.memory_space<vmem>>) attributes {dimension_semantics = [#tpu.dimension_semantics<parallel>], iteration_bounds = array<i64: 2>, scalar_prefetch = 0 : i64, scratch_operands = 0 : i64, tpu.core_type = #tpu.core_type<tc>, window_params = [{transform_indices = @transform_0, window_bounds = array<i64: 1, 1, 32>}, {transform_indices = @transform_1, window_bounds = array<i64: 1, 8, 32>}, {transform_indices = @transform_2, window_bounds = array<i64: 1, 1, 8>}]} {
    %c0 = arith.constant 0 : index
    %c0_0 = arith.constant 0 : index
    %c0_1 = arith.constant 0 : index
    %0 = vector.load %arg1[%c0, %c0_0, %c0_1] : memref<1x1x32xf32, #tpu.memory_space<vmem>>, vector<1x1x32xf32>
    %1 = vector.shape_cast %0 : vector<1x1x32xf32> to vector<1x32xf32>
    %c0_2 = arith.constant 0 : index
    %c0_3 = arith.constant 0 : index
    %c0_4 = arith.constant 0 : index
    %2 = vector.load %arg2[%c0_2, %c0_3, %c0_4] : memref<1x8x32xf32, #tpu.memory_space<vmem>>, vector<1x8x32xf32>
    %3 = vector.shape_cast %2 : vector<1x8x32xf32> to vector<8x32xf32>
    %cst = arith.constant dense<0.000000e+00> : vector<1x8xf32>
    %4 = tpu.matmul %1, %3, %cst {dimension_numbers = #tpu.dot_dimension_numbers<[1], [1], [0], [0], [0, 0, 1, 0], [], []>} : vector<1x32xf32>, vector<8x32xf32>, vector<1x8xf32> -> vector<1x8xf32>
    %cst_5 = arith.constant dense<0xFF800000> : vector<1xf32>
    %5 = vector.multi_reduction <maximumf>, %4, %cst_5 [1] : vector<1x8xf32> to vector<1xf32>
    %6 = vector.shape_cast %5 : vector<1xf32> to vector<1x1xf32>
    %7 = vector.broadcast %6 : vector<1x1xf32> to vector<1x8xf32>
    %8 = arith.subf %4, %7 : vector<1x8xf32>
    %9 = math.exp %8 : vector<1x8xf32>
    %cst_6 = arith.constant dense<0.000000e+00> : vector<1xf32>
    %10 = vector.multi_reduction <add>, %9, %cst_6 [1] : vector<1x8xf32> to vector<1xf32>
    %11 = vector.shape_cast %10 : vector<1xf32> to vector<1x1xf32>
    %12 = tpu.reciprocal %11 {approx = true} : vector<1x1xf32> -> vector<1x1xf32>
    %13 = vector.broadcast %12 : vector<1x1xf32> to vector<1x8xf32>
    %14 = arith.mulf %9, %13 : vector<1x8xf32>
    %c0_7 = arith.constant 0 : index
    %c0_8 = arith.constant 0 : index
    %c0_9 = arith.constant 0 : index
    %15 = vector.load %arg3[%c0_7, %c0_8, %c0_9] : memref<1x1x8xf32, #tpu.memory_space<vmem>>, vector<1x1x8xf32>
    %16 = vector.shape_cast %15 : vector<1x1x8xf32> to vector<1x8xf32>
    %17 = vector.shape_cast %14 : vector<1x8xf32> to vector<1x1x8xf32>
    tpu.vector_store %arg3[%c0_7, %c0_8, %c0_9], %17 {strides = array<i32>} : memref<1x1x8xf32, #tpu.memory_space<vmem>>, vector<1x1x8xf32>,
    return
  }
  func.func @transform_0(%arg0: i32) -> (i32, i32, i32) {
    %c0_i32 = arith.constant 0 : i32
    %c0_i32_0 = arith.constant 0 : i32
    %c0_i32_1 = arith.constant 0 : i32
    return %arg0, %c0_i32, %c0_i32_0 : i32, i32, i32
  }
  func.func @transform_1(%arg0: i32) -> (i32, i32, i32) {
    %c0_i32 = arith.constant 0 : i32
    %c0_i32_0 = arith.constant 0 : i32
    %c0_i32_1 = arith.constant 0 : i32
    return %arg0, %c0_i32, %c0_i32_0 : i32, i32, i32
  }
  func.func @transform_2(%arg0: i32) -> (i32, i32, i32) {
    %c0_i32 = arith.constant 0 : i32
    %c0_i32_0 = arith.constant 0 : i32
    %c0_i32_1 = arith.constant 0 : i32
    return %arg0, %c0_i32, %c0_i32_0 : i32, i32, i32
  }
}

</mosaic_0001>

<llo_original>
// kernel: attn_forward.1
$region0: #{attn_forward.1}
  #allocation0 [shape = 'u32[]', space=smem, size = 0x4, offset = 0x4, fixed_abs, tag = 'smem constant byte address 0x4 - core index']
  #allocation1 [shape = 'u32[144,128]{1,0:T(1,128)}', space=vmem, size = 0x12000, scoped, tag = 'internal scratch']
  %s0 = inlined_call_operand.vmem [shape: f32[2,1,32], index: 0, kind: input, shape index: {}]
  %s1 = inlined_call_operand.vmem [shape: f32[2,8,32], index: 1, kind: input, shape index: {}]
  %s2 = inlined_call_operand.hbm [shape: f32[2,1,8], index: 2, kind: output, shape index: {}]
  %s3 = sld [smem:[#allocation0]]
  $region41: #{attn_forward.1} parent=0
    _
  %s5 = ssub.s32 1, %s3
  %s6 = scalar_select 0, %s5, %s3
  $region1: #{attn_forward.1} parent=0
    #allocation2 [shape = 'u8[1024]{0}', space=vmem, size = 0x400, scoped, tag = 'output window, operand 0']
    #allocation3 [shape = 's32[2]{0}', space=sflag, size = 0x8, scoped, tag = 'scoped memory for attn_forward.1']
    %7 = vsyncpa [#allocation3], 0
    %s8 = scalar_lea.sflag [#allocation3], 1
    %9 = vsyncpa %s8, 0
    loop: start=0, step=1, limit=4
    $region2: #{attn_forward.1} parent=1 // loop_pre_header
      _
    $region3: #{attn_forward.1} parent=1 // loop_header
      %s11 = sphi 0, %s15
      %p12 = scmp.ge.s32.totalorder %s11, 4
      %s21 = sphi 0, %s23
      %s24 = sphi 0, %s21
      %s25 = sphi 0, %s24
      %s41 = sphi 0, %s25
      %s47 = sphi 0, %s49
      %s50 = sphi 0, %s47
      %s51 = sphi 0, %s50
      %s67 = sphi 0, %s51
      %s73 = sphi 0, %s75
      %s76 = sphi 0, %s73
      %s77 = sphi 0, %s76
      %s93 = sphi 0, %s77
    $region4: #{attn_forward.1} parent=1 // loop_header_branch
      %14 = sbr.rel (%p12) target = $region8
    $region5: #{attn_forward.1} parent=1 // loop_body
      %s16 = ssub.s32 %s11, 1
      %s17 = ssub.s32 %s11, 2
      %s18 = sadd.s32 %s11, 1
      %s19 = ssub.s32 %s11, %s18
      %p20 = scmp.eq.s32.totalorder %s19, 0
      %s22 = sadd.s32 %s21, 1
      %s23 = scalar_select %p20, %s21, %s22
      %p26 = pneg %p20
      %p27 = scmp.eq.s32.totalorder %s11, 1
      %p28 = por %p26, %p27
      %p29 = scmp.ne.s32.totalorder %s21, %s24
      %p30 = scmp.eq.s32.totalorder %s11, 0
      %p31 = por %p29, %p30
      %p32 = scmp.ne.s32.totalorder %s21, %s24
      %p33 = scmp.eq.s32.totalorder %s16, 1
      %p34 = por %p32, %p33
      %p35 = scmp.ne.s32.totalorder %s24, %s25
      %p36 = scmp.eq.s32.totalorder %s16, 0
      %p37 = por %p35, %p36
      %p38 = scmp.ne.s32.totalorder %s24, %s25
      %p39 = scmp.eq.s32.totalorder %s17, 1
      %p40 = por %p38, %p39
      %p42 = scmp.ne.s32.totalorder %s25, %s41
      %p43 = scmp.eq.s32.totalorder %s17, 0
      %p44 = por %p42, %p43
      %s45 = ssub.s32 %s11, %s18
      %p46 = scmp.eq.s32.totalorder %s45, 0
      %s48 = sadd.s32 %s47, 1
      %s49 = scalar_select %p46, %s47, %s48
      %p52 = pneg %p46
      %p53 = scmp.eq.s32.totalorder %s11, 1
      %p54 = por %p52, %p53
      %p55 = scmp.ne.s32.totalorder %s47, %s50
      %p56 = scmp.eq.s32.totalorder %s11, 0
      %p57 = por %p55, %p56
      %p58 = scmp.ne.s32.totalorder %s47, %s50
      %p59 = scmp.eq.s32.totalorder %s16, 1
      %p60 = por %p58, %p59
      %p61 = scmp.ne.s32.totalorder %s50, %s51
      %p62 = scmp.eq.s32.totalorder %s16, 0
      %p63 = por %p61, %p62
      %p64 = scmp.ne.s32.totalorder %s50, %s51
      %p65 = scmp.eq.s32.totalorder %s17, 1
      %p66 = por %p64, %p65
      %p68 = scmp.ne.s32.totalorder %s51, %s67
      %p69 = scmp.eq.s32.totalorder %s17, 0
      %p70 = por %p68, %p69
      %s71 = ssub.s32 %s11, %s18
      %p72 = scmp.eq.s32.totalorder %s71, 0
      %s74 = sadd.s32 %s73, 1
      %s75 = scalar_select %p72, %s73, %s74
      %p78 = pneg %p72
      %p79 = scmp.eq.s32.totalorder %s11, 1
      %p80 = por %p78, %p79
      %p81 = scmp.ne.s32.totalorder %s73, %s76
      %p82 = scmp.eq.s32.totalorder %s11, 0
      %p83 = por %p81, %p82
      %p84 = scmp.ne.s32.totalorder %s73, %s76
      %p85 = scmp.eq.s32.totalorder %s16, 1
      %p86 = por %p84, %p85
      %p87 = scmp.ne.s32.totalorder %s76, %s77
      %p88 = scmp.eq.s32.totalorder %s16, 0
      %p89 = por %p87, %p88
      %p90 = scmp.ne.s32.totalorder %s76, %s77
      %p91 = scmp.eq.s32.totalorder %s17, 1
      %p92 = por %p90, %p91
      %p94 = scmp.ne.s32.totalorder %s77, %s93
      %p95 = scmp.eq.s32.totalorder %s17, 0
      %p96 = por %p94, %p95
      %p97 = scmp.le.s32.totalorder 1, %s11
      %p98 = scmp.lt.s32.totalorder %s11, 3
      %p99 = pnand %p97, %p98
      %p100 = pneg %p99
      // Predicated region
      $region9: #{attn_forward.1} parent=5 // pred_check
        _
      $region10: #{attn_forward.1} parent=5 // pred_check_branch
        %102 = sbr.rel (%p99) target = $region12
      $region11: #{attn_forward.1} parent=5 // pred_region
        %s103 = ssub.s32 %s11, 1
      $region12: #{attn_forward.1} parent=5 // pred_fallthru
        _
      %p104 = scmp.lt.s32.totalorder %s11, 2
      // Predicated region
      $region13: #{attn_forward.1} parent=5 // pred_check
        %p105 = pneg %p104
      $region14: #{attn_forward.1} parent=5 // pred_check_branch
        %107 = sbr.rel (%p105) target = $region16
      $region15: #{attn_forward.1} parent=5 // pred_region
        // Predicated region
        $region17: #{attn_forward.1} parent=15 // pred_check
          %p108 = pneg %p31
        $region18: #{attn_forward.1} parent=15 // pred_check_branch
          %110 = sbr.rel (%p108) target = $region20
        $region19: #{attn_forward.1} parent=15 // pred_region
          %p111 = scmp.lt.s32.totalorder %s11, 1
          %s112 = scalar_select %p111, %s11, 1
          %s113 = scalar_lea.vmem %s0, %s112
        $region20: #{attn_forward.1} parent=15 // pred_fallthru
          _
        // Predicated region
        $region21: #{attn_forward.1} parent=15 // pred_check
          %p114 = pneg %p57
        $region22: #{attn_forward.1} parent=15 // pred_check_branch
          %116 = sbr.rel (%p114) target = $region24
        $region23: #{attn_forward.1} parent=15 // pred_region
          %p117 = scmp.lt.s32.totalorder %s11, 1
          %s118 = scalar_select %p117, %s11, 1
          %s119 = smul.addr %s118, 8
          %s120 = scalar_lea.vmem %s1, %s119
        $region24: #{attn_forward.1} parent=15 // pred_fallthru
          _
      $region16: #{attn_forward.1} parent=5 // pred_fallthru
        _
      %p121 = scmp.le.s32.totalorder 1, %s11
      %p122 = scmp.lt.s32.totalorder %s11, 3
      %p123 = pnand %p121, %p122
      %p124 = pneg %p123
      // Predicated region
      $region25: #{attn_forward.1} parent=5 // pred_check
        _
      $region26: #{attn_forward.1} parent=5 // pred_check_branch
        %126 = sbr.rel (%p123) target = $region28
      $region27: #{attn_forward.1} parent=5 // pred_region
        %s127 = ssub.s32 %s11, 1
        %p128 = scmp.lt.s32.totalorder %s16, 1
        %s129 = scalar_select %p128, %s16, 1
        %s130 = scalar_lea.vmem %s0, %s129
        %p131 = pneg %p37
        %p132 = pneg %p34
        %p133 = scmp.lt.s32.totalorder %s16, 1
        %s134 = scalar_select %p133, %s16, 1
        %s135 = smul.addr %s134, 8
        %s136 = scalar_lea.vmem %s1, %s135
        %p137 = pneg %p63
        %p138 = pneg %p60
        %p139 = pneg %p89
        %p140 = pneg %p86
        %s141 = sand.u32 %s76, 1
        %s142 = scalar_lea.sflag [#allocation3], %s141
        %s143 = sand.u32 %s76, 1
        %s144 = scalar_lea.vmem [#allocation2], %s143
        %p145 = scmp.lt.s32.totalorder %s16, 1
        %s146 = scalar_select %p145, %s16, 1
        %s147 = scalar_lea.vmem %s0, %s146
        %p148 = scmp.lt.s32.totalorder %s16, 1
        %s149 = scalar_select %p148, %s16, 1
        %s150 = smul.addr %s149, 8
        %s151 = scalar_lea.vmem %s1, %s150
        %v152 = vld [vmem:[%s147] sm:$0x1]
        %v153 = vld [vmem:[%s151] sm:$0xff]
        %vm154 = vcmask 261120
        %v156 = vsel %vm154, %v152, 0
        %v159 = vsel %vm154, %v153, 0
        %161 = vmatprep.subr.mxu0 0.0
        %162 = vmatpush1.xpose.msra.mxu0 %v159
        %163 = vmatprep.subr.mxu0 0.0
        %164 = vmatpush1.xpose.msra.mxu0 0.0
        %165 = vmatprep.subr.mxu0 0.0
        %166 = vmatpush1.xpose.msra.mxu0 0.0
        %167 = vmatprep.subr.mxu0 0.0
        %168 = vmatpush1.xpose.msra.mxu0 0.0
        %169 = vmatprep.subr.mxu0 0.0
        %170 = vmatpush1.xpose.msra.mxu0 0.0
        %171 = vmatprep.subr.mxu0 0.0
        %172 = vmatpush1.xpose.msra.mxu0 0.0
        %173 = vmatprep.subr.mxu0 0.0
        %174 = vmatpush1.xpose.msra.mxu0 0.0
        %175 = vmatprep.subr.mxu0 0.0
        %176 = vmatpush1.xpose.msra.mxu0 0.0
        %177 = vmatprep.subr.mxu0 0.0
        %178 = vmatpush1.xpose.msra.mxu0 0.0
        %179 = vmatprep.subr.mxu0 0.0
        %180 = vmatpush1.xpose.msra.mxu0 0.0
        %181 = vmatprep.subr.mxu0 0.0
        %182 = vmatpush1.xpose.msra.mxu0 0.0
        %183 = vmatprep.subr.mxu0 0.0
        %184 = vmatpush1.xpose.msra.mxu0 0.0
        %185 = vmatprep.subr.mxu0 0.0
        %186 = vmatpush1.xpose.msra.mxu0 0.0
        %187 = vmatprep.subr.mxu0 0.0
        %188 = vmatpush1.xpose.msra.mxu0 0.0
        %189 = vmatprep.subr.mxu0 0.0
        %190 = vmatpush1.xpose.msra.mxu0 0.0
        %191 = vmatprep.subr.mxu0 0.0
        %192 = vmatpush1.xpose.msra.mxu0 0.0
        %193 = vmatprep.subr.mxu0 0.0
        %194 = vmatpush1.xpose.msra.mxu0 0.0
        %195 = vmatprep.subr.mxu0 0.0
        %196 = vmatpush1.xpose.msra.mxu0 0.0
        %197 = vmatprep.subr.mxu0 0.0
        %198 = vmatpush1.xpose.msra.mxu0 0.0
        %199 = vmatprep.subr.mxu0 0.0
        %200 = vmatpush1.xpose.msra.mxu0 0.0
        %201 = vmatprep.subr.mxu0 0.0
        %202 = vmatpush1.xpose.msra.mxu0 0.0
        %203 = vmatprep.subr.mxu0 0.0
        %204 = vmatpush1.xpose.msra.mxu0 0.0
        %205 = vmatprep.subr.mxu0 0.0
        %206 = vmatpush1.xpose.msra.mxu0 0.0
        %207 = vmatprep.subr.mxu0 0.0
        %208 = vmatpush1.xpose.msra.mxu0 0.0
        %209 = vmatprep.subr.mxu0 0.0
        %210 = vmatpush1.xpose.msra.mxu0 0.0
        %211 = vmatprep.subr.mxu0 0.0
        %212 = vmatpush1.xpose.msra.mxu0 0.0
        %213 = vmatprep.subr.mxu0 0.0
        %214 = vmatpush1.xpose.msra.mxu0 0.0
        %215 = vmatprep.subr.mxu0 0.0
        %216 = vmatpush1.xpose.msra.mxu0 0.0
        %217 = vmatprep.subr.mxu0 0.0
        %218 = vmatpush1.xpose.msra.mxu0 0.0
        %219 = vmatprep.subr.mxu0 0.0
        %220 = vmatpush1.xpose.msra.mxu0 0.0
        %221 = vmatprep.subr.mxu0 0.0
        %222 = vmatpush1.xpose.msra.mxu0 0.0
        %223 = vmatprep.subr.mxu0 0.0
        %224 = vmatpush1.xpose.msra.mxu0 0.0
        %225 = vmatprep.mubr.f32.mxu0 0.0
        %226 = vmatmul.mubr.f32.gmra.mrb[0].mxu0 %v156
        %v227 = vpop.f32.mrb[0].mxu0
        %v228 = vadd.f32 0.0, %v227
        %v229 = vpop.f32.mrb[0].mxu0
        %230 = vdwg.mxu0
        %vm231 = vcmask 57344
        %v232 = vsel %vm231, %v228, -inf
        %233 = vmax.xlane.f32.xlu0 %v232
        %v234 = vpop.xlane.xlu0 %233
        %v235 = vsub.f32 %v228, %v234
        %v236 = vmul.f32 %v235, 1.442695
        %v237 = vpow.pop %v236
        %v238 = vsel %vm231, %v237, 0.0
        %239 = vadd.xlane.f32.xlu0 %v238
        %v240 = vpop.xlane.xlu0 %239
        %v241 = vrcp.pop %v240
        %v242 = vmul.f32 %v237, %v241
        %243 = vst.msk [vmem:[%s144] sm:$0x1] %vm231, %v242
        %s244 = sand.u32 %s76, 1
        %s245 = scalar_lea.sflag [#allocation3], %s244
        %s246 = sand.u32 %s76, 1
        %s247 = scalar_lea.vmem [#allocation2], %s246
        // Predicated region
        $region29: #{attn_forward.1} parent=27 // pred_check
          %p248 = pneg %p86
        $region30: #{attn_forward.1} parent=27 // pred_check_branch
          %250 = sbr.rel (%p248) target = $region32
        $region31: #{attn_forward.1} parent=27 // pred_region
          %s252 = ssub.s32 16, 16
          %253 = vsyncadd %s245, %s252
          %s254 = smul.addr %s16, 16
          %s255 = scalar_lea.hbm %s2, %s254
          %s257 = sshll.u32 %s247, 4
          %s258 = int_to_ptr.vmem [resolvable:$true] %s257
          %260 = dma.vmem_to_hbm [thread:$0]  %s258, 16, %s255, %s245
        $region32: #{attn_forward.1} parent=27 // pred_fallthru
          _
      $region28: #{attn_forward.1} parent=5 // pred_fallthru
        _
      %p261 = scmp.le.s32.totalorder 2, %s11
      // Predicated region
      $region33: #{attn_forward.1} parent=5 // pred_check
        %p262 = pneg %p261
      $region34: #{attn_forward.1} parent=5 // pred_check_branch
        %264 = sbr.rel (%p262) target = $region36
      $region35: #{attn_forward.1} parent=5 // pred_region
        %s265 = ssub.s32 %s11, 2
        // Predicated region
        $region37: #{attn_forward.1} parent=35 // pred_check
          %p266 = pneg %p92
        $region38: #{attn_forward.1} parent=35 // pred_check_branch
          %268 = sbr.rel (%p266) target = $region40
        $region39: #{attn_forward.1} parent=35 // pred_region
          %s269 = sand.u32 %s77, 1
          %s270 = scalar_lea.sflag [#allocation3], %s269
          %s271 = sand.u32 %s77, 1
          %s272 = scalar_lea.vmem [#allocation2], %s271
          %273 = dma.done %s270, 16
        $region40: #{attn_forward.1} parent=35 // pred_fallthru
          _
      $region36: #{attn_forward.1} parent=5 // pred_fallthru
        _
    $region6: #{attn_forward.1} parent=1 // loop_footer
      %s15 = sadd.s32 1, %s11
    $region7: #{attn_forward.1} parent=1 // loop_footer_branch
      %10 = sbr.rel target = $region3
    $region8: #{attn_forward.1} parent=1 // loop_exit
      _
    %274 = vsyncpa [#allocation3], 1
    %s275 = scalar_lea.sflag [#allocation3], 1
    %276 = vsyncpa %s275, 1

</llo_original>
